<compile_context>
chip_gen: v7x
topology: tpu7x:2x2x1
jax: 0.10.0
libtpu: 0.0.40
codegen_flags: <defaults>
</compile_context>

<pallas_src>
import jax
import jax.numpy as jnp
from jax import lax
from jax.experimental import pallas as pl
from jax.experimental.pallas import tpu as pltpu


C_PAD = 128  # lane-dense padded width for the num_class logits


def _arma_fused_kernel(x_ref, adj_ref, w1i_ref, w1r_ref, b1_ref,
                       w2i_ref, w2r_ref, b2_ref, o_ref):
    """Fused conv1(ReLU) -> conv2 -> log_softmax for ARMA (K=1, T=1, eval)."""
    x = x_ref[...]                    # (N, F)   f32
    adj = adj_ref[...]                # (N, N)   adj[i, j] = weight of edge j -> i

    # gcn_norm, add_self_loops=False:
    #   deg[i]        = sum_j adj[i, j]                (in-degree at target i)
    #   w(j -> i)     = deg[i]^-1/2 * deg[j]^-1/2      (0 where deg == 0)
    deg = jnp.sum(adj, axis=1, keepdims=True)                 # (N, 1)
    dinv = jnp.where(deg > 0.0, lax.rsqrt(deg), 0.0)          # (N, 1)  EUP rsqrt

    def prop(z):
        # D^{-1/2} A D^{-1/2} @ z without materializing the scaled adjacency.
        return dinv * jnp.dot(adj, dinv * z,
                              preferred_element_type=jnp.float32)

    # ---- conv1: ARMAConv(32 -> 32), act=ReLU; dropout on root = identity (eval)
    h = prop(jnp.dot(x, w1i_ref[...], preferred_element_type=jnp.float32))
    h = h + jnp.dot(x, w1r_ref[...], preferred_element_type=jnp.float32)
    h = h + b1_ref[...]
    h = jnp.maximum(h, 0.0)                                   # ReLU

    # ---- conv2: ARMAConv(32 -> num_class), act=None, padded to 128 lanes.
    # Padded weight columns are zero and padded bias lanes are -1e30, so the
    # padded logits vanish under the softmax below.
    y = prop(jnp.dot(h, w2i_ref[...], preferred_element_type=jnp.float32))
    y = y + jnp.dot(h, w2r_ref[...], preferred_element_type=jnp.float32)
    y = y + b2_ref[...]

    # ---- log_softmax over the lane dimension (padded lanes contribute 0)
    m = jnp.max(y, axis=1, keepdims=True)
    s = y - m
    lse = jnp.log(jnp.sum(jnp.exp(s), axis=1, keepdims=True))
    o_ref[...] = (s - lse).astype(o_ref.dtype)


def arma_forward(x, adj, params, num_class=2):
    """ARMA forward: one fused pallas_call, returns (N, num_class) log-probs."""
    n, _ = x.shape
    hidden = params["w1_init"].shape[1]

    # Lane-dense padding of the tiny classification head (num_class=2 -> 128).
    w2i = jnp.zeros((hidden, C_PAD), jnp.float32).at[:, :num_class].set(params["w2_init"])
    w2r = jnp.zeros((hidden, C_PAD), jnp.float32).at[:, :num_class].set(params["w2_root"])
    b2 = jnp.full((1, C_PAD), -1e30, jnp.float32).at[:, :num_class].set(params["b2"])

    out_pad = pl.pallas_call(
        _arma_fused_kernel,
        out_shape=jax.ShapeDtypeStruct((n, C_PAD), jnp.float32),
        grid=(1,),
        in_specs=[
            pl.BlockSpec(x.shape, lambda i: (0, 0)),
            pl.BlockSpec(adj.shape, lambda i: (0, 0)),
            pl.BlockSpec(params["w1_init"].shape, lambda i: (0, 0)),
            pl.BlockSpec(params["w1_root"].shape, lambda i: (0, 0)),
            pl.BlockSpec(params["b1"].shape, lambda i: (0, 0)),
            pl.BlockSpec(w2i.shape, lambda i: (0, 0)),
            pl.BlockSpec(w2r.shape, lambda i: (0, 0)),
            pl.BlockSpec(b2.shape, lambda i: (0, 0)),
        ],
        out_specs=pl.BlockSpec((n, C_PAD), lambda i: (0, 0)),
        compiler_params=pltpu.CompilerParams(
            dimension_semantics=("arbitrary",)),
    )(x, adj, params["w1_init"], params["w1_root"], params["b1"], w2i, w2r, b2)

    return out_pad[:, :num_class]


def init_params(key, features_num=32, hidden=32, num_class=2):
    """Glorot-uniform init matching ARMAConv parameter shapes (K=1, T=1).

    The unused `weight` parameter (only active for num_layers > 1) is omitted,
    as is dropout (identity in eval mode).
    """
    def glorot(k, shape):
        fan_in, fan_out = shape[-2], shape[-1]
        lim = jnp.sqrt(6.0 / (fan_in + fan_out))
        return jax.random.uniform(k, shape, jnp.float32, -lim, lim)

    ks = jax.random.split(key, 4)
    return dict(
        w1_init=glorot(ks[0], (features_num, hidden)),   # conv1.init_weight[0]
        w1_root=glorot(ks[1], (features_num, hidden)),   # conv1.root_weight[0,0]
        b1=jnp.zeros((1, hidden), jnp.float32),          # conv1.bias[0,0]
        w2_init=glorot(ks[2], (hidden, num_class)),      # conv2.init_weight[0]
        w2_root=glorot(ks[3], (hidden, num_class)),      # conv2.root_weight[0,0]
        b2=jnp.zeros((1, num_class), jnp.float32),       # conv2.bias[0,0]
    )


def arma_reference(x, adj, params):
    """Pure-JAX reference of the same forward pass (for correctness check)."""
    deg = jnp.sum(adj, axis=1, keepdims=True)
    dinv = jnp.where(deg > 0.0, 1.0 / jnp.sqrt(deg), 0.0)
    prop = lambda z: dinv * (adj @ (dinv * z))
    h = jax.nn.relu(prop(x @ params["w1_init"]) + x @ params["w1_root"] + params["b1"])
    y = prop(h @ params["w2_init"]) + h @ params["w2_root"] + params["b2"]
    return jax.nn.log_softmax(y, axis=1)


if __name__ == "__main__":
    N, F, E, NUM_CLASS = 16, 32, 48, 2

    key = jax.random.PRNGKey(0)
    kx, ksrc, kdst, kparams = jax.random.split(key, 4)

    x = jax.random.normal(kx, (N, F), jnp.float32)

    # random edge_index -> dense adjacency, adj[dst, src] += 1
    # (ARMAConv's gcn_norm does NOT add self loops)
    src = jax.random.randint(ksrc, (E,), 0, N)
    dst = jax.random.randint(kdst, (E,), 0, N)
    adj = jnp.zeros((N, N), jnp.float32).at[dst, src].add(1.0)

    params = init_params(kparams, features_num=F, hidden=32, num_class=NUM_CLASS)

    out = arma_forward(x, adj, params, num_class=NUM_CLASS)
    out = jax.block_until_ready(out)

    ref = arma_reference(x, adj, params)

    assert out.shape == (N, NUM_CLASS)
    # rows of log_softmax should exp-sum to 1
    assert bool(jnp.allclose(jnp.sum(jnp.exp(out), axis=1), 1.0, atol=1e-4))
    # match the pure-JAX reference
    assert bool(jnp.allclose(out, ref, atol=1e-4, rtol=1e-4))
    print("KERNEL_OK")
</pallas_src>

<mosaic_0001>
module attributes {stable_mosaic.version = 11 : i64} {
  func.func @_arma_fused_kernel(%arg0: i32, %arg1: memref<16x32xf32, #tpu.memory_space<vmem>>, %arg2: memref<16x16xf32, #tpu.memory_space<vmem>>, %arg3: memref<32x32xf32, #tpu.memory_space<vmem>>, %arg4: memref<32x32xf32, #tpu.memory_space<vmem>>, %arg5: memref<1x32xf32, #tpu.memory_space<vmem>>, %arg6: memref<32x128xf32, #tpu.memory_space<vmem>>, %arg7: memref<32x128xf32, #tpu.memory_space<vmem>>, %arg8: memref<1x128xf32, #tpu.memory_space<vmem>>, %arg9: memref<16x128xf32, #tpu.memory_space<vmem>>) attributes {dimension_semantics = [#tpu.dimension_semantics<arbitrary>], iteration_bounds = array<i64: 1>, scalar_prefetch = 0 : i64, scratch_operands = 0 : i64, tpu.core_type = #tpu.core_type<tc>, window_params = [{pipeline_mode = #tpu.pipeline_mode<synchronous>, transform_indices = @transform_0, window_bounds = array<i64: 16, 32>}, {pipeline_mode = #tpu.pipeline_mode<synchronous>, transform_indices = @transform_1, window_bounds = array<i64: 16, 16>}, {pipeline_mode = #tpu.pipeline_mode<synchronous>, transform_indices = @transform_2, window_bounds = array<i64: 32, 32>}, {pipeline_mode = #tpu.pipeline_mode<synchronous>, transform_indices = @transform_3, window_bounds = array<i64: 32, 32>}, {pipeline_mode = #tpu.pipeline_mode<synchronous>, transform_indices = @transform_4, window_bounds = array<i64: 1, 32>}, {pipeline_mode = #tpu.pipeline_mode<synchronous>, transform_indices = @transform_5, window_bounds = array<i64: 32, 128>}, {pipeline_mode = #tpu.pipeline_mode<synchronous>, transform_indices = @transform_6, window_bounds = array<i64: 32, 128>}, {pipeline_mode = #tpu.pipeline_mode<synchronous>, transform_indices = @transform_7, window_bounds = array<i64: 1, 128>}, {pipeline_mode = #tpu.pipeline_mode<synchronous>, transform_indices = @transform_8, window_bounds = array<i64: 16, 128>}]} {
    %c0 = arith.constant 0 : index
    %c0_0 = arith.constant 0 : index
    %0 = vector.load %arg1[%c0, %c0_0] : memref<16x32xf32, #tpu.memory_space<vmem>>, vector<16x32xf32>
    %c0_1 = arith.constant 0 : index
    %c0_2 = arith.constant 0 : index
    %1 = vector.load %arg2[%c0_1, %c0_2] : memref<16x16xf32, #tpu.memory_space<vmem>>, vector<16x16xf32>
    %cst = arith.constant dense<0.000000e+00> : vector<16xf32>
    %2 = vector.multi_reduction <add>, %1, %cst [1] : vector<16x16xf32> to vector<16xf32>
    %3 = vector.shape_cast %2 : vector<16xf32> to vector<16x1xf32>
    %cst_3 = arith.constant 0.000000e+00 : f32
    %4 = vector.broadcast %cst_3 : f32 to vector<16x1xf32>
    %5 = arith.cmpf ogt, %3, %4 : vector<16x1xf32>
    %6 = math.rsqrt %3 : vector<16x1xf32>
    %cst_4 = arith.constant 0.000000e+00 : f32
    %7 = vector.broadcast %cst_4 : f32 to vector<16x1xf32>
    %8 = arith.select %5, %6, %7 : vector<16x1xi1>, vector<16x1xf32>
    %c0_5 = arith.constant 0 : index
    %c0_6 = arith.constant 0 : index
    %9 = vector.load %arg3[%c0_5, %c0_6] : memref<32x32xf32, #tpu.memory_space<vmem>>, vector<32x32xf32>
    %cst_7 = arith.constant dense<0.000000e+00> : vector<16x32xf32>
    %10 = tpu.matmul %0, %9, %cst_7 {dimension_numbers = #tpu.dot_dimension_numbers<[1], [0], [0], [1], [0, 0, 1, 1], [], []>} : vector<16x32xf32>, vector<32x32xf32>, vector<16x32xf32> -> vector<16x32xf32>
    %11 = vector.broadcast %8 : vector<16x1xf32> to vector<16x32xf32>
    %12 = arith.mulf %11, %10 : vector<16x32xf32>
    %cst_8 = arith.constant dense<0.000000e+00> : vector<16x32xf32>
    %13 = tpu.matmul %1, %12, %cst_8 {dimension_numbers = #tpu.dot_dimension_numbers<[1], [0], [0], [1], [0, 0, 1, 1], [], []>} : vector<16x16xf32>, vector<16x32xf32>, vector<16x32xf32> -> vector<16x32xf32>
    %14 = vector.broadcast %8 : vector<16x1xf32> to vector<16x32xf32>
    %15 = arith.mulf %14, %13 : vector<16x32xf32>
    %c0_9 = arith.constant 0 : index
    %c0_10 = arith.constant 0 : index
    %16 = vector.load %arg4[%c0_9, %c0_10] : memref<32x32xf32, #tpu.memory_space<vmem>>, vector<32x32xf32>
    %cst_11 = arith.constant dense<0.000000e+00> : vector<16x32xf32>
    %17 = tpu.matmul %0, %16, %cst_11 {dimension_numbers = #tpu.dot_dimension_numbers<[1], [0], [0], [1], [0, 0, 1, 1], [], []>} : vector<16x32xf32>, vector<32x32xf32>, vector<16x32xf32> -> vector<16x32xf32>
    %18 = arith.addf %15, %17 : vector<16x32xf32>
    %c0_12 = arith.constant 0 : index
    %c0_13 = arith.constant 0 : index
    %19 = vector.load %arg5[%c0_12, %c0_13] : memref<1x32xf32, #tpu.memory_space<vmem>>, vector<1x32xf32>
    %20 = vector.broadcast %19 : vector<1x32xf32> to vector<16x32xf32>
    %21 = arith.addf %18, %20 : vector<16x32xf32>
    %cst_14 = arith.constant 0.000000e+00 : f32
    %22 = vector.broadcast %cst_14 : f32 to vector<16x32xf32>
    %23 = arith.maximumf %21, %22 : vector<16x32xf32>
    %c0_15 = arith.constant 0 : index
    %c0_16 = arith.constant 0 : index
    %24 = vector.load %arg6[%c0_15, %c0_16] : memref<32x128xf32, #tpu.memory_space<vmem>>, vector<32x128xf32>
    %cst_17 = arith.constant dense<0.000000e+00> : vector<16x128xf32>
    %25 = tpu.matmul %23, %24, %cst_17 {dimension_numbers = #tpu.dot_dimension_numbers<[1], [0], [0], [1], [0, 0, 1, 1], [], []>} : vector<16x32xf32>, vector<32x128xf32>, vector<16x128xf32> -> vector<16x128xf32>
    %26 = vector.broadcast %8 : vector<16x1xf32> to vector<16x128xf32>
    %27 = arith.mulf %26, %25 : vector<16x128xf32>
    %cst_18 = arith.constant dense<0.000000e+00> : vector<16x128xf32>
    %28 = tpu.matmul %1, %27, %cst_18 {dimension_numbers = #tpu.dot_dimension_numbers<[1], [0], [0], [1], [0, 0, 1, 1], [], []>} : vector<16x16xf32>, vector<16x128xf32>, vector<16x128xf32> -> vector<16x128xf32>
    %29 = vector.broadcast %8 : vector<16x1xf32> to vector<16x128xf32>
    %30 = arith.mulf %29, %28 : vector<16x128xf32>
    %c0_19 = arith.constant 0 : index
    %c0_20 = arith.constant 0 : index
    %31 = vector.load %arg7[%c0_19, %c0_20] : memref<32x128xf32, #tpu.memory_space<vmem>>, vector<32x128xf32>
    %cst_21 = arith.constant dense<0.000000e+00> : vector<16x128xf32>
    %32 = tpu.matmul %23, %31, %cst_21 {dimension_numbers = #tpu.dot_dimension_numbers<[1], [0], [0], [1], [0, 0, 1, 1], [], []>} : vector<16x32xf32>, vector<32x128xf32>, vector<16x128xf32> -> vector<16x128xf32>
    %33 = arith.addf %30, %32 : vector<16x128xf32>
    %c0_22 = arith.constant 0 : index
    %c0_23 = arith.constant 0 : index
    %34 = vector.load %arg8[%c0_22, %c0_23] : memref<1x128xf32, #tpu.memory_space<vmem>>, vector<1x128xf32>
    %35 = vector.broadcast %34 : vector<1x128xf32> to vector<16x128xf32>
    %36 = arith.addf %33, %35 : vector<16x128xf32>
    %cst_24 = arith.constant dense<0xFF800000> : vector<16xf32>
    %37 = vector.multi_reduction <maximumf>, %36, %cst_24 [1] : vector<16x128xf32> to vector<16xf32>
    %38 = vector.shape_cast %37 : vector<16xf32> to vector<16x1xf32>
    %39 = vector.broadcast %38 : vector<16x1xf32> to vector<16x128xf32>
    %40 = arith.subf %36, %39 : vector<16x128xf32>
    %41 = math.exp %40 : vector<16x128xf32>
    %cst_25 = arith.constant dense<0.000000e+00> : vector<16xf32>
    %42 = vector.multi_reduction <add>, %41, %cst_25 [1] : vector<16x128xf32> to vector<16xf32>
    %43 = vector.shape_cast %42 : vector<16xf32> to vector<16x1xf32>
    %44 = math.log %43 : vector<16x1xf32>
    %45 = vector.broadcast %44 : vector<16x1xf32> to vector<16x128xf32>
    %46 = arith.subf %40, %45 : vector<16x128xf32>
    %c0_26 = arith.constant 0 : index
    %c0_27 = arith.constant 0 : index
    %47 = vector.load %arg9[%c0_26, %c0_27] : memref<16x128xf32, #tpu.memory_space<vmem>>, vector<16x128xf32>
    tpu.vector_store %arg9[%c0_26, %c0_27], %46 {strides = array<i32>} : memref<16x128xf32, #tpu.memory_space<vmem>>, vector<16x128xf32>,
    return
  }
  func.func @transform_0(%arg0: i32) -> (i32, i32) {
    %c0_i32 = arith.constant 0 : i32
    %c0_i32_0 = arith.constant 0 : i32
    %c0_i32_1 = arith.constant 0 : i32
    return %c0_i32, %c0_i32_0 : i32, i32
  }
  func.func @transform_1(%arg0: i32) -> (i32, i32) {
    %c0_i32 = arith.constant 0 : i32
    %c0_i32_0 = arith.constant 0 : i32
    %c0_i32_1 = arith.constant 0 : i32
    return %c0_i32, %c0_i32_0 : i32, i32
  }
  func.func @transform_2(%arg0: i32) -> (i32, i32) {
    %c0_i32 = arith.constant 0 : i32
    %c0_i32_0 = arith.constant 0 : i32
    %c0_i32_1 = arith.constant 0 : i32
    return %c0_i32, %c0_i32_0 : i32, i32
  }
  func.func @transform_3(%arg0: i32) -> (i32, i32) {
    %c0_i32 = arith.constant 0 : i32
    %c0_i32_0 = arith.constant 0 : i32
    %c0_i32_1 = arith.constant 0 : i32
    return %c0_i32, %c0_i32_0 : i32, i32
  }
  func.func @transform_4(%arg0: i32) -> (i32, i32) {
    %c0_i32 = arith.constant 0 : i32
    %c0_i32_0 = arith.constant 0 : i32
    %c0_i32_1 = arith.constant 0 : i32
    return %c0_i32, %c0_i32_0 : i32, i32
  }
  func.func @transform_5(%arg0: i32) -> (i32, i32) {
    %c0_i32 = arith.constant 0 : i32
    %c0_i32_0 = arith.constant 0 : i32
    %c0_i32_1 = arith.constant 0 : i32
    return %c0_i32, %c0_i32_0 : i32, i32
  }
  func.func @transform_6(%arg0: i32) -> (i32, i32) {
    %c0_i32 = arith.constant 0 : i32
    %c0_i32_0 = arith.constant 0 : i32
    %c0_i32_1 = arith.constant 0 : i32
    return %c0_i32, %c0_i32_0 : i32, i32
  }
  func.func @transform_7(%arg0: i32) -> (i32, i32) {
    %c0_i32 = arith.constant 0 : i32
    %c0_i32_0 = arith.constant 0 : i32
    %c0_i32_1 = arith.constant 0 : i32
    return %c0_i32, %c0_i32_0 : i32, i32
  }
  func.func @transform_8(%arg0: i32) -> (i32, i32) {
    %c0_i32 = arith.constant 0 : i32
    %c0_i32_0 = arith.constant 0 : i32
    %c0_i32_1 = arith.constant 0 : i32
    return %c0_i32, %c0_i32_0 : i32, i32
  }
}

</mosaic_0001>

<llo_original>
// kernel: tpu_custom_call.1
$region0: #{tpu_custom_call.1}
  #allocation0 [shape = 'u32[]', space=smem, size = 0x4, offset = 0x4, fixed_abs, tag = 'smem constant byte address 0x4 - core index']
  #allocation1 [shape = 'u32[144,128]{1,0:T(1,128)}', space=vmem, size = 0x12000, scoped, tag = 'internal scratch']
  %s0 = inlined_call_operand.hbm [shape: f32[16,32], index: 0, kind: input, shape index: {}]
  %s1 = inlined_call_operand.hbm [shape: f32[16,16], index: 1, kind: input, shape index: {}]
  %s2 = inlined_call_operand.hbm [shape: f32[32,32], index: 2, kind: input, shape index: {}]
  %s3 = inlined_call_operand.hbm [shape: f32[32,32], index: 3, kind: input, shape index: {}]
  %s4 = inlined_call_operand.vmem [shape: f32[1,32], index: 4, kind: input, shape index: {}]
  %s5 = inlined_call_operand.hbm [shape: f32[32,128], index: 5, kind: input, shape index: {}]
  %s6 = inlined_call_operand.hbm [shape: f32[32,128], index: 6, kind: input, shape index: {}]
  %s7 = inlined_call_operand.vmem [shape: f32[1,128], index: 7, kind: input, shape index: {}]
  %s8 = inlined_call_operand.hbm [shape: f32[16,128], index: 8, kind: output, shape index: {}]
  %s9 = sld [smem:[#allocation0]]
  $region66: #{tpu_custom_call.1} parent=0
    _
  %s11 = ssub.s32 1, %s9
  %s12 = scalar_select 0, %s11, %s9
  $region1: #{tpu_custom_call.1} parent=0
    #allocation2 [shape = 'u8[8192]{0}', space=vmem, size = 0x2000, scoped, tag = 'input window, operand 0, single buffered']
    #allocation3 [shape = 's32[1]{0}', space=sflag, size = 0x4, scoped, tag = 'scoped memory for tpu_custom_call.1']
    #allocation4 [shape = 's32[1]{0}', space=sflag, size = 0x4, scoped, tag = 'scoped memory for tpu_custom_call.1']
    #allocation5 [shape = 'u8[8192]{0}', space=vmem, size = 0x2000, scoped, tag = 'input window, operand 1, single buffered']
    #allocation6 [shape = 's32[1]{0}', space=sflag, size = 0x4, scoped, tag = 'scoped memory for tpu_custom_call.1']
    #allocation7 [shape = 'u8[16384]{0}', space=vmem, size = 0x4000, scoped, tag = 'input window, operand 2, single buffered']
    #allocation8 [shape = 'u8[16384]{0}', space=vmem, size = 0x4000, scoped, tag = 'input window, operand 3, single buffered']
    #allocation9 [shape = 's32[1]{0}', space=sflag, size = 0x4, scoped, tag = 'scoped memory for tpu_custom_call.1']
    #allocation10 [shape = 'u8[16384]{0}', space=vmem, size = 0x4000, scoped, tag = 'input window, operand 5, single buffered']
    #allocation11 [shape = 'u8[16384]{0}', space=vmem, size = 0x4000, scoped, tag = 'input window, operand 6, single buffered']
    #allocation12 [shape = 's32[1]{0}', space=sflag, size = 0x4, scoped, tag = 'scoped memory for tpu_custom_call.1']
    #allocation13 [shape = 'u8[8192]{0}', space=vmem, size = 0x2000, scoped, tag = 'output window, operand 0, single buffered']
    %13 = vsyncpa [#allocation3], 0
    %14 = vsyncpa [#allocation6], 0
    %15 = vsyncpa [#allocation9], 0
    %16 = vsyncpa [#allocation12], 0
    %17 = vsyncpa [#allocation4], 0
    // Predicated region
    $region2: #{tpu_custom_call.1} parent=1 // pred_check
      _
    $region3: #{tpu_custom_call.1} parent=1 // pred_check_branch
      %19 = sbr.rel (0) target = $region5
    $region4: #{tpu_custom_call.1} parent=1 // pred_region
      %s21 = ssub.s32 256, 256
      %22 = vsyncadd [#allocation3], %s21
      %s23 = sshll.u32 [#allocation2], 4
      %s24 = int_to_ptr.vmem [resolvable:$true] %s23
      %29 = dma.hbm_to_vmem [thread:$0]  %s0, 256, %s24, [#allocation3], 128, 128, 8
    $region5: #{tpu_custom_call.1} parent=1 // pred_fallthru
      _
    // Predicated region
    $region6: #{tpu_custom_call.1} parent=1 // pred_check
      _
    $region7: #{tpu_custom_call.1} parent=1 // pred_check_branch
      %31 = sbr.rel (0) target = $region9
    $region8: #{tpu_custom_call.1} parent=1 // pred_region
      %s33 = ssub.s32 256, 256
      %34 = vsyncadd [#allocation6], %s33
      %s35 = sshll.u32 [#allocation5], 4
      %s36 = int_to_ptr.vmem [resolvable:$true] %s35
      %41 = dma.hbm_to_vmem [thread:$0]  %s1, 256, %s36, [#allocation6], 128, 128, 8
    $region9: #{tpu_custom_call.1} parent=1 // pred_fallthru
      _
    // Predicated region
    $region10: #{tpu_custom_call.1} parent=1 // pred_check
      _
    $region11: #{tpu_custom_call.1} parent=1 // pred_check_branch
      %43 = sbr.rel (0) target = $region13
    $region12: #{tpu_custom_call.1} parent=1 // pred_region
      %s45 = ssub.s32 512, 512
      %46 = vsyncadd [#allocation6], %s45
      %s47 = sshll.u32 [#allocation7], 4
      %s48 = int_to_ptr.vmem [resolvable:$true] %s47
      %53 = dma.hbm_to_vmem [thread:$0]  %s2, 512, %s48, [#allocation6], 128, 128, 8
    $region13: #{tpu_custom_call.1} parent=1 // pred_fallthru
      _
    // Predicated region
    $region14: #{tpu_custom_call.1} parent=1 // pred_check
      _
    $region15: #{tpu_custom_call.1} parent=1 // pred_check_branch
      %55 = sbr.rel (0) target = $region17
    $region16: #{tpu_custom_call.1} parent=1 // pred_region
      %s57 = ssub.s32 512, 512
      %58 = vsyncadd [#allocation9], %s57
      %s59 = sshll.u32 [#allocation8], 4
      %s60 = int_to_ptr.vmem [resolvable:$true] %s59
      %65 = dma.hbm_to_vmem [thread:$0]  %s3, 512, %s60, [#allocation9], 128, 128, 8
    $region17: #{tpu_custom_call.1} parent=1 // pred_fallthru
      _
    // Predicated region
    $region18: #{tpu_custom_call.1} parent=1 // pred_check
      _
    $region19: #{tpu_custom_call.1} parent=1 // pred_check_branch
      %67 = sbr.rel (0) target = $region21
    $region20: #{tpu_custom_call.1} parent=1 // pred_region
      _
    $region21: #{tpu_custom_call.1} parent=1 // pred_fallthru
      _
    // Predicated region
    $region22: #{tpu_custom_call.1} parent=1 // pred_check
      _
    $region23: #{tpu_custom_call.1} parent=1 // pred_check_branch
      %69 = sbr.rel (0) target = $region25
    $region24: #{tpu_custom_call.1} parent=1 // pred_region
      %s71 = ssub.s32 512, 512
      %72 = vsyncadd [#allocation9], %s71
      %s73 = sshll.u32 [#allocation10], 4
      %s74 = int_to_ptr.vmem [resolvable:$true] %s73
      %79 = dma.hbm_to_vmem [thread:$0]  %s5, 512, %s74, [#allocation9], 128, 128, 8
    $region25: #{tpu_custom_call.1} parent=1 // pred_fallthru
      _
    // Predicated region
    $region26: #{tpu_custom_call.1} parent=1 // pred_check
      _
    $region27: #{tpu_custom_call.1} parent=1 // pred_check_branch
      %81 = sbr.rel (0) target = $region29
    $region28: #{tpu_custom_call.1} parent=1 // pred_region
      %s83 = ssub.s32 512, 512
      %84 = vsyncadd [#allocation12], %s83
      %s85 = sshll.u32 [#allocation11], 4
      %s86 = int_to_ptr.vmem [resolvable:$true] %s85
      %91 = dma.hbm_to_vmem [thread:$0]  %s6, 512, %s86, [#allocation12], 128, 128, 8
    $region29: #{tpu_custom_call.1} parent=1 // pred_fallthru
      _
    // Predicated region
    $region30: #{tpu_custom_call.1} parent=1 // pred_check
      _
    $region31: #{tpu_custom_call.1} parent=1 // pred_check_branch
      %93 = sbr.rel (0) target = $region33
    $region32: #{tpu_custom_call.1} parent=1 // pred_region
      _
    $region33: #{tpu_custom_call.1} parent=1 // pred_fallthru
      _
    // Predicated region
    $region34: #{tpu_custom_call.1} parent=1 // pred_check
      _
    $region35: #{tpu_custom_call.1} parent=1 // pred_check_branch
      %95 = sbr.rel (0) target = $region37
    $region36: #{tpu_custom_call.1} parent=1 // pred_region
      %96 = dma.done [#allocation3], 256
    $region37: #{tpu_custom_call.1} parent=1 // pred_fallthru
      _
    // Predicated region
    $region38: #{tpu_custom_call.1} parent=1 // pred_check
      _
    $region39: #{tpu_custom_call.1} parent=1 // pred_check_branch
      %98 = sbr.rel (0) target = $region41
    $region40: #{tpu_custom_call.1} parent=1 // pred_region
      %99 = dma.done [#allocation6], 256
    $region41: #{tpu_custom_call.1} parent=1 // pred_fallthru
      _
    // Predicated region
    $region42: #{tpu_custom_call.1} parent=1 // pred_check
      _
    $region43: #{tpu_custom_call.1} parent=1 // pred_check_branch
      %101 = sbr.rel (0) target = $region45
    $region44: #{tpu_custom_call.1} parent=1 // pred_region
      %102 = dma.done [#allocation6], 512
    $region45: #{tpu_custom_call.1} parent=1 // pred_fallthru
      _
    // Predicated region
    $region46: #{tpu_custom_call.1} parent=1 // pred_check
      _
    $region47: #{tpu_custom_call.1} parent=1 // pred_check_branch
      %104 = sbr.rel (0) target = $region49
    $region48: #{tpu_custom_call.1} parent=1 // pred_region
      %105 = dma.done [#allocation9], 512
    $region49: #{tpu_custom_call.1} parent=1 // pred_fallthru
      _
    // Predicated region
    $region50: #{tpu_custom_call.1} parent=1 // pred_check
      _
    $region51: #{tpu_custom_call.1} parent=1 // pred_check_branch
      %107 = sbr.rel (0) target = $region53
    $region52: #{tpu_custom_call.1} parent=1 // pred_region
      %108 = dma.done [#allocation9], 512
    $region53: #{tpu_custom_call.1} parent=1 // pred_fallthru
      _
    // Predicated region
    $region54: #{tpu_custom_call.1} parent=1 // pred_check
      _
    $region55: #{tpu_custom_call.1} parent=1 // pred_check_branch
      %110 = sbr.rel (0) target = $region57
    $region56: #{tpu_custom_call.1} parent=1 // pred_region
      %111 = dma.done [#allocation12], 512
    $region57: #{tpu_custom_call.1} parent=1 // pred_fallthru
      _
    %v112 = vld [vmem:[#allocation2] sm:$0xff]
    %v113 = vld [vmem:[#allocation2 + $0x8] sm:$0xff]
    %v114 = vld [vmem:[#allocation5] sm:$0xff]
    %v115 = vld [vmem:[#allocation5 + $0x8] sm:$0xff]
    %vm116 = vcmask 130048
    %v117 = vsel %vm116, %v114, 0.0
    %118 = vadd.xlane.f32.xlu0 %v117
    %v119 = vpop.xlane.xlu0 %118
    %v120 = vsel %vm116, %v115, 0.0
    %121 = vadd.xlane.f32.xlu0 %v120
    %v122 = vpop.xlane.xlu0 %121
    %vm123 = vcmp.gt.f32.partialorder %v119, 0.0
    %vm124 = vcmp.gt.f32.partialorder %v122, 0.0
    %v125 = vrsqrt.pop %v119
    %v126 = vrsqrt.pop %v122
    %v127 = vsel %vm123, %v125, 0.0
    %v128 = vsel %vm124, %v126, 0.0
    %v129 = vld [vmem:[#allocation7] sm:$0xff]
    %v130 = vld [vmem:[#allocation7 + $0x8] sm:$0xff]
    %v131 = vld [vmem:[#allocation7 + $0x10] sm:$0xff]
    %v132 = vld [vmem:[#allocation7 + $0x18] sm:$0xff]
    %vm133 = vcmask 261120
    %v135 = vsel %vm133, %v112, 0
    %v138 = vsel %vm133, %v113, 0
    %140 = vmatprep.subr.mxu0 0.0
    %141 = vmatpush1.msra.mxu0 %v129
    %142 = vmatprep.subr.mxu0 0.0
    %143 = vmatpush1.msra.mxu0 %v130
    %144 = vmatprep.subr.mxu0 0.0
    %145 = vmatpush1.msra.mxu0 %v131
    %146 = vmatprep.subr.mxu0 0.0
    %147 = vmatpush1.msra.mxu0 %v132
    %148 = vmatprep.subr.mxu0 0.0
    %149 = vmatpush1.msra.mxu0 0.0
    %150 = vmatprep.subr.mxu0 0.0
    %151 = vmatpush1.msra.mxu0 0.0
    %152 = vmatprep.subr.mxu0 0.0
    %153 = vmatpush1.msra.mxu0 0.0
    %154 = vmatprep.subr.mxu0 0.0
    %155 = vmatpush1.msra.mxu0 0.0
    %156 = vmatprep.subr.mxu0 0.0
    %157 = vmatpush1.msra.mxu0 0.0
    %158 = vmatprep.subr.mxu0 0.0
    %159 = vmatpush1.msra.mxu0 0.0
    %160 = vmatprep.subr.mxu0 0.0
    %161 = vmatpush1.msra.mxu0 0.0
    %162 = vmatprep.subr.mxu0 0.0
    %163 = vmatpush1.msra.mxu0 0.0
    %164 = vmatprep.subr.mxu0 0.0
    %165 = vmatpush1.msra.mxu0 0.0
    %166 = vmatprep.subr.mxu0 0.0
    %167 = vmatpush1.msra.mxu0 0.0
    %168 = vmatprep.subr.mxu0 0.0
    %169 = vmatpush1.msra.mxu0 0.0
    %170 = vmatprep.subr.mxu0 0.0
    %171 = vmatpush1.msra.mxu0 0.0
    %172 = vmatprep.subr.mxu0 0.0
    %173 = vmatpush1.msra.mxu0 0.0
    %174 = vmatprep.subr.mxu0 0.0
    %175 = vmatpush1.msra.mxu0 0.0
    %176 = vmatprep.subr.mxu0 0.0
    %177 = vmatpush1.msra.mxu0 0.0
    %178 = vmatprep.subr.mxu0 0.0
    %179 = vmatpush1.msra.mxu0 0.0
    %180 = vmatprep.subr.mxu0 0.0
    %181 = vmatpush1.msra.mxu0 0.0
    %182 = vmatprep.subr.mxu0 0.0
    %183 = vmatpush1.msra.mxu0 0.0
    %184 = vmatprep.subr.mxu0 0.0
    %185 = vmatpush1.msra.mxu0 0.0
    %186 = vmatprep.subr.mxu0 0.0
    %187 = vmatpush1.msra.mxu0 0.0
    %188 = vmatprep.subr.mxu0 0.0
    %189 = vmatpush1.msra.mxu0 0.0
    %190 = vmatprep.subr.mxu0 0.0
    %191 = vmatpush1.msra.mxu0 0.0
    %192 = vmatprep.subr.mxu0 0.0
    %193 = vmatpush1.msra.mxu0 0.0
    %194 = vmatprep.subr.mxu0 0.0
    %195 = vmatpush1.msra.mxu0 0.0
    %196 = vmatprep.subr.mxu0 0.0
    %197 = vmatpush1.msra.mxu0 0.0
    %198 = vmatprep.subr.mxu0 0.0
    %199 = vmatpush1.msra.mxu0 0.0
    %200 = vmatprep.subr.mxu0 0.0
    %201 = vmatpush1.msra.mxu0 0.0
    %202 = vmatprep.subr.mxu0 0.0
    %203 = vmatpush1.msra.mxu0 0.0
    %204 = vmatprep.mubr.f32.mxu0 0.0
    %205 = vmatmul.mubr.f32.gmra.mrb[0].mxu0 %v135
    %v206 = vpop.f32.mrb[0].mxu0
    %v207 = vadd.f32 0.0, %v206
    %v208 = vpop.f32.mrb[0].mxu0
    %209 = vmatprep.mubr.f32.mxu0 0.0
    %210 = vmatmul.mubr.f32.gmra.mrb[0].mxu0 %v138
    %v211 = vpop.f32.mrb[0].mxu0
    %v212 = vadd.f32 0.0, %v211
    %v213 = vpop.f32.mrb[0].mxu0
    %214 = vdwg.mxu0
    %v215 = vmul.f32 %v127, %v207
    %v216 = vmul.f32 %v128, %v212
    %v218 = vsel %vm116, %v114, 0
    %v221 = vsel %vm116, %v115, 0
    %223 = vmatprep.subr.mxu0 0.0
    %224 = vmatpush1.msra.mxu0 %v215
    %225 = vmatprep.subr.mxu0 0.0
    %226 = vmatpush1.msra.mxu0 %v216
    %227 = vmatprep.subr.mxu0 0.0
    %228 = vmatpush1.msra.mxu0 0.0
    %229 = vmatprep.subr.mxu0 0.0
    %230 = vmatpush1.msra.mxu0 0.0
    %231 = vmatprep.subr.mxu0 0.0
    %232 = vmatpush1.msra.mxu0 0.0
    %233 = vmatprep.subr.mxu0 0.0
    %234 = vmatpush1.msra.mxu0 0.0
    %235 = vmatprep.subr.mxu0 0.0
    %236 = vmatpush1.msra.mxu0 0.0
    %237 = vmatprep.subr.mxu0 0.0
    %238 = vmatpush1.msra.mxu0 0.0
    %239 = vmatprep.subr.mxu0 0.0
    %240 = vmatpush1.msra.mxu0 0.0
    %241 = vmatprep.subr.mxu0 0.0
    %242 = vmatpush1.msra.mxu0 0.0
    %243 = vmatprep.subr.mxu0 0.0
    %244 = vmatpush1.msra.mxu0 0.0
    %245 = vmatprep.subr.mxu0 0.0
    %246 = vmatpush1.msra.mxu0 0.0
    %247 = vmatprep.subr.mxu0 0.0
    %248 = vmatpush1.msra.mxu0 0.0
    %249 = vmatprep.subr.mxu0 0.0
    %250 = vmatpush1.msra.mxu0 0.0
    %251 = vmatprep.subr.mxu0 0.0
    %252 = vmatpush1.msra.mxu0 0.0
    %253 = vmatprep.subr.mxu0 0.0
    %254 = vmatpush1.msra.mxu0 0.0
    %255 = vmatprep.subr.mxu0 0.0
    %256 = vmatpush1.msra.mxu0 0.0
    %257 = vmatprep.subr.mxu0 0.0
    %258 = vmatpush1.msra.mxu0 0.0
    %259 = vmatprep.subr.mxu0 0.0
    %260 = vmatpush1.msra.mxu0 0.0
    %261 = vmatprep.subr.mxu0 0.0
    %262 = vmatpush1.msra.mxu0 0.0
    %263 = vmatprep.subr.mxu0 0.0
    %264 = vmatpush1.msra.mxu0 0.0
    %265 = vmatprep.subr.mxu0 0.0
    %266 = vmatpush1.msra.mxu0 0.0
    %267 = vmatprep.subr.mxu0 0.0
    %268 = vmatpush1.msra.mxu0 0.0
    %269 = vmatprep.subr.mxu0 0.0
    %270 = vmatpush1.msra.mxu0 0.0
    %271 = vmatprep.subr.mxu0 0.0
    %272 = vmatpush1.msra.mxu0 0.0
    %273 = vmatprep.subr.mxu0 0.0
    %274 = vmatpush1.msra.mxu0 0.0
    %275 = vmatprep.subr.mxu0 0.0
    %276 = vmatpush1.msra.mxu0 0.0
    %277 = vmatprep.subr.mxu0 0.0
    %278 = vmatpush1.msra.mxu0 0.0
    %279 = vmatprep.subr.mxu0 0.0
    %280 = vmatpush1.msra.mxu0 0.0
    %281 = vmatprep.subr.mxu0 0.0
    %282 = vmatpush1.msra.mxu0 0.0
    %283 = vmatprep.subr.mxu0 0.0
    %284 = vmatpush1.msra.mxu0 0.0
    %285 = vmatprep.subr.mxu0 0.0
    %286 = vmatpush1.msra.mxu0 0.0
    %287 = vmatprep.mubr.f32.mxu0 0.0
    %288 = vmatmul.mubr.f32.gmra.mrb[0].mxu0 %v218
    %v289 = vpop.f32.mrb[0].mxu0
    %v290 = vadd.f32 0.0, %v289
    %v291 = vpop.f32.mrb[0].mxu0
    %292 = vmatprep.mubr.f32.mxu0 0.0
    %293 = vmatmul.mubr.f32.gmra.mrb[0].mxu0 %v221
    %v294 = vpop.f32.mrb[0].mxu0
    %v295 = vadd.f32 0.0, %v294
    %v296 = vpop.f32.mrb[0].mxu0
    %297 = vdwg.mxu0
    %v298 = vmul.f32 %v127, %v290
    %v299 = vmul.f32 %v128, %v295
    %v300 = vld [vmem:[#allocation8] sm:$0xff]
    %v301 = vld [vmem:[#allocation8 + $0x8] sm:$0xff]
    %v302 = vld [vmem:[#allocation8 + $0x10] sm:$0xff]
    %v303 = vld [vmem:[#allocation8 + $0x18] sm:$0xff]
    %304 = vmatprep.subr.mxu0 0.0
    %305 = vmatpush1.msra.mxu0 %v300
    %306 = vmatprep.subr.mxu0 0.0
    %307 = vmatpush1.msra.mxu0 %v301
    %308 = vmatprep.subr.mxu0 0.0
    %309 = vmatpush1.msra.mxu0 %v302
    %310 = vmatprep.subr.mxu0 0.0
    %311 = vmatpush1.msra.mxu0 %v303
    %312 = vmatprep.subr.mxu0 0.0
    %313 = vmatpush1.msra.mxu0 0.0
    %314 = vmatprep.subr.mxu0 0.0
    %315 = vmatpush1.msra.mxu0 0.0
    %316 = vmatprep.subr.mxu0 0.0
    %317 = vmatpush1.msra.mxu0 0.0
    %318 = vmatprep.subr.mxu0 0.0
    %319 = vmatpush1.msra.mxu0 0.0
    %320 = vmatprep.subr.mxu0 0.0
    %321 = vmatpush1.msra.mxu0 0.0
    %322 = vmatprep.subr.mxu0 0.0
    %323 = vmatpush1.msra.mxu0 0.0
    %324 = vmatprep.subr.mxu0 0.0
    %325 = vmatpush1.msra.mxu0 0.0
    %326 = vmatprep.subr.mxu0 0.0
    %327 = vmatpush1.msra.mxu0 0.0
    %328 = vmatprep.subr.mxu0 0.0
    %329 = vmatpush1.msra.mxu0 0.0
    %330 = vmatprep.subr.mxu0 0.0
    %331 = vmatpush1.msra.mxu0 0.0
    %332 = vmatprep.subr.mxu0 0.0
    %333 = vmatpush1.msra.mxu0 0.0
    %334 = vmatprep.subr.mxu0 0.0
    %335 = vmatpush1.msra.mxu0 0.0
    %336 = vmatprep.subr.mxu0 0.0
    %337 = vmatpush1.msra.mxu0 0.0
    %338 = vmatprep.subr.mxu0 0.0
    %339 = vmatpush1.msra.mxu0 0.0
    %340 = vmatprep.subr.mxu0 0.0
    %341 = vmatpush1.msra.mxu0 0.0
    %342 = vmatprep.subr.mxu0 0.0
    %343 = vmatpush1.msra.mxu0 0.0
    %344 = vmatprep.subr.mxu0 0.0
    %345 = vmatpush1.msra.mxu0 0.0
    %346 = vmatprep.subr.mxu0 0.0
    %347 = vmatpush1.msra.mxu0 0.0
    %348 = vmatprep.subr.mxu0 0.0
    %349 = vmatpush1.msra.mxu0 0.0
    %350 = vmatprep.subr.mxu0 0.0
    %351 = vmatpush1.msra.mxu0 0.0
    %352 = vmatprep.subr.mxu0 0.0
    %353 = vmatpush1.msra.mxu0 0.0
    %354 = vmatprep.subr.mxu0 0.0
    %355 = vmatpush1.msra.mxu0 0.0
    %356 = vmatprep.subr.mxu0 0.0
    %357 = vmatpush1.msra.mxu0 0.0
    %358 = vmatprep.subr.mxu0 0.0
    %359 = vmatpush1.msra.mxu0 0.0
    %360 = vmatprep.subr.mxu0 0.0
    %361 = vmatpush1.msra.mxu0 0.0
    %362 = vmatprep.subr.mxu0 0.0
    %363 = vmatpush1.msra.mxu0 0.0
    %364 = vmatprep.subr.mxu0 0.0
    %365 = vmatpush1.msra.mxu0 0.0
    %366 = vmatprep.subr.mxu0 0.0
    %367 = vmatpush1.msra.mxu0 0.0
    %368 = vmatprep.mubr.f32.mxu0 0.0
    %369 = vmatmul.mubr.f32.gmra.mrb[0].mxu0 %v135
    %v370 = vpop.f32.mrb[0].mxu0
    %v371 = vadd.f32 0.0, %v370
    %v372 = vpop.f32.mrb[0].mxu0
    %373 = vmatprep.mubr.f32.mxu0 0.0
    %374 = vmatmul.mubr.f32.gmra.mrb[0].mxu0 %v138
    %v375 = vpop.f32.mrb[0].mxu0
    %v376 = vadd.f32 0.0, %v375
    %v377 = vpop.f32.mrb[0].mxu0
    %378 = vdwg.mxu0
    %v379 = vadd.f32 %v298, %v371
    %v380 = vadd.f32 %v299, %v376
    %v381 = vld [vmem:[%s4] sm:$0x1]
    %v383 = vlaneseq
    %v384 = vshrl.u32 %v383, 7
    %v385 = vsub.s32 0, %v384
    %v386 = vrot.slane %v381, %v385
    %v388 = vadd.f32 %v379, %v386
    %v389 = vadd.f32 %v380, %v386
    %v390 = vmax.f32 %v388, 0.0
    %v391 = vmax.f32 %v389, 0.0
    %v392 = vld [vmem:[#allocation10] sm:$0xff]
    %v393 = vld [vmem:[#allocation10 + $0x8] sm:$0xff]
    %v394 = vld [vmem:[#allocation10 + $0x10] sm:$0xff]
    %v395 = vld [vmem:[#allocation10 + $0x18] sm:$0xff]
    %v397 = vsel %vm133, %v390, 0
    %v400 = vsel %vm133, %v391, 0
    %402 = vmatprep.subr.mxu0 0.0
    %403 = vmatpush1.msra.mxu0 %v392
    %404 = vmatprep.subr.mxu0 0.0
    %405 = vmatpush1.msra.mxu0 %v393
    %406 = vmatprep.subr.mxu0 0.0
    %407 = vmatpush1.msra.mxu0 %v394
    %408 = vmatprep.subr.mxu0 0.0
    %409 = vmatpush1.msra.mxu0 %v395
    %410 = vmatprep.subr.mxu0 0.0
    %411 = vmatpush1.msra.mxu0 0.0
    %412 = vmatprep.subr.mxu0 0.0
    %413 = vmatpush1.msra.mxu0 0.0
    %414 = vmatprep.subr.mxu0 0.0
    %415 = vmatpush1.msra.mxu0 0.0
    %416 = vmatprep.subr.mxu0 0.0
    %417 = vmatpush1.msra.mxu0 0.0
    %418 = vmatprep.subr.mxu0 0.0
    %419 = vmatpush1.msra.mxu0 0.0
    %420 = vmatprep.subr.mxu0 0.0
    %421 = vmatpush1.msra.mxu0 0.0
    %422 = vmatprep.subr.mxu0 0.0
    %423 = vmatpush1.msra.mxu0 0.0
    %424 = vmatprep.subr.mxu0 0.0
    %425 = vmatpush1.msra.mxu0 0.0
    %426 = vmatprep.subr.mxu0 0.0
    %427 = vmatpush1.msra.mxu0 0.0
    %428 = vmatprep.subr.mxu0 0.0
    %429 = vmatpush1.msra.mxu0 0.0
    %430 = vmatprep.subr.mxu0 0.0
    %431 = vmatpush1.msra.mxu0 0.0
    %432 = vmatprep.subr.mxu0 0.0
    %433 = vmatpush1.msra.mxu0 0.0
    %434 = vmatprep.subr.mxu0 0.0
    %435 = vmatpush1.msra.mxu0 0.0
    %436 = vmatprep.subr.mxu0 0.0
    %437 = vmatpush1.msra.mxu0 0.0
    %438 = vmatprep.subr.mxu0 0.0
    %439 = vmatpush1.msra.mxu0 0.0
    %440 = vmatprep.subr.mxu0 0.0
    %441 = vmatpush1.msra.mxu0 0.0
    %442 = vmatprep.subr.mxu0 0.0
    %443 = vmatpush1.msra.mxu0 0.0
    %444 = vmatprep.subr.mxu0 0.0
    %445 = vmatpush1.msra.mxu0 0.0
    %446 = vmatprep.subr.mxu0 0.0
    %447 = vmatpush1.msra.mxu0 0.0
    %448 = vmatprep.subr.mxu0 0.0
    %449 = vmatpush1.msra.mxu0 0.0
    %450 = vmatprep.subr.mxu0 0.0
    %451 = vmatpush1.msra.mxu0 0.0
    %452 = vmatprep.subr.mxu0 0.0
    %453 = vmatpush1.msra.mxu0 0.0
    %454 = vmatprep.subr.mxu0 0.0
    %455 = vmatpush1.msra.mxu0 0.0
    %456 = vmatprep.subr.mxu0 0.0
    %457 = vmatpush1.msra.mxu0 0.0
    %458 = vmatprep.subr.mxu0 0.0
    %459 = vmatpush1.msra.mxu0 0.0
    %460 = vmatprep.subr.mxu0 0.0
    %461 = vmatpush1.msra.mxu0 0.0
    %462 = vmatprep.subr.mxu0 0.0
    %463 = vmatpush1.msra.mxu0 0.0
    %464 = vmatprep.subr.mxu0 0.0
    %465 = vmatpush1.msra.mxu0 0.0
    %466 = vmatprep.mubr.f32.mxu0 0.0
    %467 = vmatmul.mubr.f32.gmra.mrb[0].mxu0 %v397
    %v468 = vpop.f32.mrb[0].mxu0
    %v469 = vadd.f32 0.0, %v468
    %v470 = vpop.f32.mrb[0].mxu0
    %471 = vmatprep.mubr.f32.mxu0 0.0
    %472 = vmatmul.mubr.f32.gmra.mrb[0].mxu0 %v400
    %v473 = vpop.f32.mrb[0].mxu0
    %v474 = vadd.f32 0.0, %v473
    %v475 = vpop.f32.mrb[0].mxu0
    %476 = vdwg.mxu0
    %v477 = vmul.f32 %v127, %v469
    %v478 = vmul.f32 %v128, %v474
    %479 = vmatprep.subr.mxu0 0.0
    %480 = vmatpush1.msra.mxu0 %v477
    %481 = vmatprep.subr.mxu0 0.0
    %482 = vmatpush1.msra.mxu0 %v478
    %483 = vmatprep.subr.mxu0 0.0
    %484 = vmatpush1.msra.mxu0 0.0
    %485 = vmatprep.subr.mxu0 0.0
    %486 = vmatpush1.msra.mxu0 0.0
    %487 = vmatprep.subr.mxu0 0.0
    %488 = vmatpush1.msra.mxu0 0.0
    %489 = vmatprep.subr.mxu0 0.0
    %490 = vmatpush1.msra.mxu0 0.0
    %491 = vmatprep.subr.mxu0 0.0
    %492 = vmatpush1.msra.mxu0 0.0
    %493 = vmatprep.subr.mxu0 0.0
    %494 = vmatpush1.msra.mxu0 0.0
    %495 = vmatprep.subr.mxu0 0.0
    %496 = vmatpush1.msra.mxu0 0.0
    %497 = vmatprep.subr.mxu0 0.0
    %498 = vmatpush1.msra.mxu0 0.0
    %499 = vmatprep.subr.mxu0 0.0
    %500 = vmatpush1.msra.mxu0 0.0
    %501 = vmatprep.subr.mxu0 0.0
    %502 = vmatpush1.msra.mxu0 0.0
    %503 = vmatprep.subr.mxu0 0.0
    %504 = vmatpush1.msra.mxu0 0.0
    %505 = vmatprep.subr.mxu0 0.0
    %506 = vmatpush1.msra.mxu0 0.0
    %507 = vmatprep.subr.mxu0 0.0
    %508 = vmatpush1.msra.mxu0 0.0
    %509 = vmatprep.subr.mxu0 0.0
    %510 = vmatpush1.msra.mxu0 0.0
    %511 = vmatprep.subr.mxu0 0.0
    %512 = vmatpush1.msra.mxu0 0.0
    %513 = vmatprep.subr.mxu0 0.0
    %514 = vmatpush1.msra.mxu0 0.0
    %515 = vmatprep.subr.mxu0 0.0
    %516 = vmatpush1.msra.mxu0 0.0
    %517 = vmatprep.subr.mxu0 0.0
    %518 = vmatpush1.msra.mxu0 0.0
    %519 = vmatprep.subr.mxu0 0.0
    %520 = vmatpush1.msra.mxu0 0.0
    %521 = vmatprep.subr.mxu0 0.0
    %522 = vmatpush1.msra.mxu0 0.0
    %523 = vmatprep.subr.mxu0 0.0
    %524 = vmatpush1.msra.mxu0 0.0
    %525 = vmatprep.subr.mxu0 0.0
    %526 = vmatpush1.msra.mxu0 0.0
    %527 = vmatprep.subr.mxu0 0.0
    %528 = vmatpush1.msra.mxu0 0.0
    %529 = vmatprep.subr.mxu0 0.0
    %530 = vmatpush1.msra.mxu0 0.0
    %531 = vmatprep.subr.mxu0 0.0
    %532 = vmatpush1.msra.mxu0 0.0
    %533 = vmatprep.subr.mxu0 0.0
    %534 = vmatpush1.msra.mxu0 0.0
    %535 = vmatprep.subr.mxu0 0.0
    %536 = vmatpush1.msra.mxu0 0.0
    %537 = vmatprep.subr.mxu0 0.0
    %538 = vmatpush1.msra.mxu0 0.0
    %539 = vmatprep.subr.mxu0 0.0
    %540 = vmatpush1.msra.mxu0 0.0
    %541 = vmatprep.subr.mxu0 0.0
    %542 = vmatpush1.msra.mxu0 0.0
    %543 = vmatprep.mubr.f32.mxu0 0.0
    %544 = vmatmul.mubr.f32.gmra.mrb[0].mxu0 %v218
    %v545 = vpop.f32.mrb[0].mxu0
    %v546 = vadd.f32 0.0, %v545
    %v547 = vpop.f32.mrb[0].mxu0
    %548 = vmatprep.mubr.f32.mxu0 0.0
    %549 = vmatmul.mubr.f32.gmra.mrb[0].mxu0 %v221
    %v550 = vpop.f32.mrb[0].mxu0
    %v551 = vadd.f32 0.0, %v550
    %v552 = vpop.f32.mrb[0].mxu0
    %553 = vdwg.mxu0
    %v554 = vmul.f32 %v127, %v546
    %v555 = vmul.f32 %v128, %v551
    %v556 = vld [vmem:[#allocation11] sm:$0xff]
    %v557 = vld [vmem:[#allocation11 + $0x8] sm:$0xff]
    %v558 = vld [vmem:[#allocation11 + $0x10] sm:$0xff]
    %v559 = vld [vmem:[#allocation11 + $0x18] sm:$0xff]
    %560 = vmatprep.subr.mxu0 0.0
    %561 = vmatpush1.msra.mxu0 %v556
    %562 = vmatprep.subr.mxu0 0.0
    %563 = vmatpush1.msra.mxu0 %v557
    %564 = vmatprep.subr.mxu0 0.0
    %565 = vmatpush1.msra.mxu0 %v558
    %566 = vmatprep.subr.mxu0 0.0
    %567 = vmatpush1.msra.mxu0 %v559
    %568 = vmatprep.subr.mxu0 0.0
    %569 = vmatpush1.msra.mxu0 0.0
    %570 = vmatprep.subr.mxu0 0.0
    %571 = vmatpush1.msra.mxu0 0.0
    %572 = vmatprep.subr.mxu0 0.0
    %573 = vmatpush1.msra.mxu0 0.0
    %574 = vmatprep.subr.mxu0 0.0
    %575 = vmatpush1.msra.mxu0 0.0
    %576 = vmatprep.subr.mxu0 0.0
    %577 = vmatpush1.msra.mxu0 0.0
    %578 = vmatprep.subr.mxu0 0.0
    %579 = vmatpush1.msra.mxu0 0.0
    %580 = vmatprep.subr.mxu0 0.0
    %581 = vmatpush1.msra.mxu0 0.0
    %582 = vmatprep.subr.mxu0 0.0
    %583 = vmatpush1.msra.mxu0 0.0
    %584 = vmatprep.subr.mxu0 0.0
    %585 = vmatpush1.msra.mxu0 0.0
    %586 = vmatprep.subr.mxu0 0.0
    %587 = vmatpush1.msra.mxu0 0.0
    %588 = vmatprep.subr.mxu0 0.0
    %589 = vmatpush1.msra.mxu0 0.0
    %590 = vmatprep.subr.mxu0 0.0
    %591 = vmatpush1.msra.mxu0 0.0
    %592 = vmatprep.subr.mxu0 0.0
    %593 = vmatpush1.msra.mxu0 0.0
    %594 = vmatprep.subr.mxu0 0.0
    %595 = vmatpush1.msra.mxu0 0.0
    %596 = vmatprep.subr.mxu0 0.0
    %597 = vmatpush1.msra.mxu0 0.0
    %598 = vmatprep.subr.mxu0 0.0
    %599 = vmatpush1.msra.mxu0 0.0
    %600 = vmatprep.subr.mxu0 0.0
    %601 = vmatpush1.msra.mxu0 0.0
    %602 = vmatprep.subr.mxu0 0.0
    %603 = vmatpush1.msra.mxu0 0.0
    %604 = vmatprep.subr.mxu0 0.0
    %605 = vmatpush1.msra.mxu0 0.0
    %606 = vmatprep.subr.mxu0 0.0
    %607 = vmatpush1.msra.mxu0 0.0
    %608 = vmatprep.subr.mxu0 0.0
    %609 = vmatpush1.msra.mxu0 0.0
    %610 = vmatprep.subr.mxu0 0.0
    %611 = vmatpush1.msra.mxu0 0.0
    %612 = vmatprep.subr.mxu0 0.0
    %613 = vmatpush1.msra.mxu0 0.0
    %614 = vmatprep.subr.mxu0 0.0
    %615 = vmatpush1.msra.mxu0 0.0
    %616 = vmatprep.subr.mxu0 0.0
    %617 = vmatpush1.msra.mxu0 0.0
    %618 = vmatprep.subr.mxu0 0.0
    %619 = vmatpush1.msra.mxu0 0.0
    %620 = vmatprep.subr.mxu0 0.0
    %621 = vmatpush1.msra.mxu0 0.0
    %622 = vmatprep.subr.mxu0 0.0
    %623 = vmatpush1.msra.mxu0 0.0
    %624 = vmatprep.mubr.f32.mxu0 0.0
    %625 = vmatmul.mubr.f32.gmra.mrb[0].mxu0 %v397
    %v626 = vpop.f32.mrb[0].mxu0
    %v627 = vadd.f32 0.0, %v626
    %v628 = vpop.f32.mrb[0].mxu0
    %629 = vmatprep.mubr.f32.mxu0 0.0
    %630 = vmatmul.mubr.f32.gmra.mrb[0].mxu0 %v400
    %v631 = vpop.f32.mrb[0].mxu0
    %v632 = vadd.f32 0.0, %v631
    %v633 = vpop.f32.mrb[0].mxu0
    %634 = vdwg.mxu0
    %v635 = vadd.f32 %v554, %v627
    %v636 = vadd.f32 %v555, %v632
    %v637 = vld [vmem:[%s7] sm:$0x1]
    %v639 = vlaneseq
    %v640 = vshrl.u32 %v639, 7
    %v641 = vsub.s32 0, %v640
    %v642 = vrot.slane %v637, %v641
    %v644 = vadd.f32 %v635, %v642
    %v645 = vadd.f32 %v636, %v642
    %646 = vmax.xlane.f32.xlu0 %v644
    %v647 = vpop.xlane.xlu0 %646
    %648 = vmax.xlane.f32.xlu0 %v645
    %v649 = vpop.xlane.xlu0 %648
    %v650 = vsub.f32 %v644, %v647
    %v651 = vsub.f32 %v645, %v649
    %v652 = vmul.f32 %v650, 1.442695
    %v653 = vpow.pop %v652
    %v654 = vmul.f32 %v651, 1.442695
    %v655 = vpow.pop %v654
    %656 = vadd.xlane.f32.xlu0 %v653
    %v657 = vpop.xlane.xlu0 %656
    %658 = vadd.xlane.f32.xlu0 %v655
    %v659 = vpop.xlane.xlu0 %658
    %v660 = vlog2.pop %v657
    %v661 = vmul.f32 %v660, 0.6931472
    %v662 = vlog2.pop %v659
    %v663 = vmul.f32 %v662, 0.6931472
    %v664 = vsub.f32 %v650, %v661
    %v665 = vsub.f32 %v651, %v663
    %666 = vst [vmem:[#allocation13] sm:$0xff] %v664
    %667 = vst [vmem:[#allocation13 + $0x8] sm:$0xff] %v665
    // Predicated region
    $region58: #{tpu_custom_call.1} parent=1 // pred_check
      _
    $region59: #{tpu_custom_call.1} parent=1 // pred_check_branch
      %669 = sbr.rel (0) target = $region61
    $region60: #{tpu_custom_call.1} parent=1 // pred_region
      %s671 = ssub.s32 256, 256
      %672 = vsyncadd [#allocation4], %s671
      %s673 = sshll.u32 [#allocation13], 4
      %s674 = int_to_ptr.vmem [resolvable:$true] %s673
      %679 = dma.vmem_to_hbm [thread:$0]  %s674, 256, %s8, [#allocation4], 128, 128, 8
    $region61: #{tpu_custom_call.1} parent=1 // pred_fallthru
      _
    // Predicated region
    $region62: #{tpu_custom_call.1} parent=1 // pred_check
      _
    $region63: #{tpu_custom_call.1} parent=1 // pred_check_branch
      %681 = sbr.rel (0) target = $region65
    $region64: #{tpu_custom_call.1} parent=1 // pred_region
      %682 = dma.done [#allocation4], 256
    $region65: #{tpu_custom_call.1} parent=1 // pred_fallthru
      _
    %683 = vsyncpa [#allocation3], 1
    %684 = vsyncpa [#allocation6], 1
    %685 = vsyncpa [#allocation9], 1
    %686 = vsyncpa [#allocation12], 1
    %687 = vsyncpa [#allocation4], 1

</llo_original>
